<compile_context>
chip_gen: v6e
topology: v6e:2x2x1
jax: 0.10.0
libtpu: 0.0.40
codegen_flags: <defaults>
</compile_context>

<pallas_src>
import jax
import jax.numpy as jnp
from jax.experimental import pallas as pl
from jax.experimental.pallas import tpu as pltpu


def _round_up(v, m):
    return ((v + m - 1) // m) * m


def _pick_tile(n_pad, cap, prefer_even_count=False):
    """Largest multiple of 128 <= cap that divides n_pad (n_pad % 128 == 0).

    With prefer_even_count=True, try to return a tile giving an even number of
    tiles (so the parallel dst axis shards across v7x's 2 TensorCores).
    """
    t = max(128, (min(cap, n_pad) // 128) * 128)
    while n_pad % t != 0:
        t -= 128
    if prefer_even_count and (n_pad // t) % 2 != 0:
        t2 = t - 128
        while t2 >= 128:
            if n_pad % t2 == 0 and (n_pad // t2) % 2 == 0:
                return t2
            t2 -= 128
    return t


def _lightgcn_kernel(kidx_ref, cnt_ref, a_ref, x_ref, o_ref, acc_ref):
    # kidx_ref: [num_i*max_nnz] int32 SMEM  compacted src-tile schedule (prefetch)
    # cnt_ref : [num_i]         int32 SMEM  #nonzero src tiles per dst tile
    # a_ref   : [TM, TK]  normalized adjacency tile (compute dtype)
    # x_ref   : [TK, Fp]  source features            (compute dtype)
    # acc_ref : [TM, Fp]  f32 accumulator scratch (persists across s)
    i = pl.program_id(0)          # dst tile (parallel)
    s = pl.program_id(1)          # compacted contraction step (arbitrary, last)

    @pl.when(s == 0)
    def _init():
        acc_ref[...] = jnp.zeros_like(acc_ref)

    @pl.when(s < cnt_ref[i])      # padded steps: no MXU work (and no new DMA)
    def _accumulate():
        acc_ref[...] += jnp.dot(a_ref[...], x_ref[...],
                                preferred_element_type=jnp.float32)

    @pl.when(s == pl.num_programs(1) - 1)
    def _finalize():
        o_ref[...] = acc_ref[...].astype(o_ref.dtype)


def lightgcn_conv(x, edge_index, edge_weight=None, *,
                  compute_dtype=jnp.bfloat16, tm_cap=2048, tk_cap=1024):
    """LightGCN propagation. x:[N,F] f32, edge_index:[2,E] int32, edge_weight:[E]|None."""
    n, f = x.shape
    e = edge_index.shape[1]
    row = edge_index[0].astype(jnp.int32)   # src
    col = edge_index[1].astype(jnp.int32)   # dst
    if edge_weight is None:
        edge_weight = jnp.ones((e,), dtype=jnp.float32)
    edge_weight = edge_weight.astype(jnp.float32)

    n_pad = _round_up(max(n, 128), 128)
    f_pad = _round_up(max(f, 128), 128)
    tm = _pick_tile(n_pad, tm_cap, prefer_even_count=True)   # dst tile
    tk = _pick_tile(n_pad, tk_cap)                            # src tile
    num_i, num_k = n_pad // tm, n_pad // tk

    # ------------- plain-JAX glue: degree + one normalized f32 scatter ---------
    # deg = unweighted in-degree of dst nodes (matches torch_geometric degree)
    deg = jnp.zeros((n_pad,), jnp.float32).at[col].add(1.0)
    dis = jnp.where(deg > 0, jax.lax.rsqrt(jnp.maximum(deg, 1e-12)), 0.0)
    norm = dis[row] * edge_weight * dis[col]      # folded symmetric normalization

    # A_norm[dst, src]; duplicate edges accumulate exactly in f32, cast once.
    adj = jnp.zeros((n_pad, n_pad), jnp.float32).at[col, row].add(norm)
    adj_c = adj.astype(compute_dtype)

    x_c = jnp.zeros((n_pad, f_pad), compute_dtype).at[:n, :f].set(
        x.astype(compute_dtype))

    # ------- compacted data-dependent contraction schedule (per dst tile) ------
    # Tile-hit map built straight from the edge list (no dense-adjacency pass).
    tile_hit = jnp.zeros((num_i, num_k), jnp.int32).at[
        col // tm, row // tk].max(jnp.ones_like(row))
    counts = jnp.sum(tile_hit, axis=1).astype(jnp.int32)        # [num_i]
    # TODO(synk): under jit max_nnz needs a static bound (num_k); the wrapper
    # runs eagerly here so the concrete maximum can be used directly.
    max_nnz = max(int(jnp.max(counts)), 1)
    order = jnp.argsort(1 - tile_hit, axis=1, stable=True).astype(jnp.int32)
    kidx = order[:, :max_nnz]                                   # hits first, ascending
    step_ids = jnp.arange(max_nnz, dtype=jnp.int32)[None, :]
    last_valid = jnp.clip(counts - 1, 0, max_nnz - 1)[:, None]
    fill = jnp.take_along_axis(kidx, last_valid, axis=1)        # repeat last valid idx
    kidx = jnp.where(step_ids < counts[:, None], kidx, fill)
    kidx_flat = kidx.reshape(-1)            # 1-D int32 -> no 2-D SMEM lane padding

    # ------------------------------ sizing / cost ------------------------------
    a_item = jnp.dtype(compute_dtype).itemsize
    out_item = jnp.dtype(x.dtype).itemsize
    vmem_needed = (2 * tm * tk * a_item           # A tiles, double-buffered
                   + 2 * tk * f_pad * a_item      # x tiles
                   + 2 * tm * f_pad * out_item    # out tiles
                   + tm * f_pad * 4)              # f32 accumulator
    vmem_limit = min(max(2 * vmem_needed, 16 * 2**20), 48 * 2**20)
    vmem_limit = int(min(max(vmem_limit, vmem_needed + (2 << 20)), 60 * 2**20))

    nnz_tiles = int(jnp.sum(counts))
    cost = pl.CostEstimate(
        flops=2 * nnz_tiles * tm * tk * f_pad,
        transcendentals=0,
        bytes_accessed=(nnz_tiles * tm * tk * a_item        # only nonzero A tiles
                        + nnz_tiles * tk * f_pad * a_item   # x re-read per hit tile
                        + n_pad * f_pad * out_item
                        + (num_i * max_nnz + num_i) * 4),
    )

    grid_spec = pltpu.PrefetchScalarGridSpec(
        num_scalar_prefetch=2,
        grid=(num_i, max_nnz),                   # contraction (compacted) axis LAST
        in_specs=[
            pl.BlockSpec((tm, tk),
                         lambda i, s, kidx, cnt: (i, kidx[i * max_nnz + s])),
            pl.BlockSpec((tk, f_pad),
                         lambda i, s, kidx, cnt: (kidx[i * max_nnz + s], 0)),
        ],
        out_specs=pl.BlockSpec((tm, f_pad), lambda i, s, kidx, cnt: (i, 0)),
        scratch_shapes=[pltpu.VMEM((tm, f_pad), jnp.float32)],
    )

    out_pad = pl.pallas_call(
        _lightgcn_kernel,
        out_shape=jax.ShapeDtypeStruct((n_pad, f_pad), x.dtype),
        grid_spec=grid_spec,
        compiler_params=pltpu.CompilerParams(
            dimension_semantics=("parallel", "arbitrary"),
            vmem_limit_bytes=vmem_limit),
        cost_estimate=cost,
    )(kidx_flat, counts, adj_c, x_c)

    return out_pad[:n, :f]


def _reference(x, edge_index, edge_weight=None):
    """Pure-JAX f32 reference mirroring the PyTorch forward exactly."""
    n = x.shape[0]
    row, col = edge_index[0], edge_index[1]
    e = edge_index.shape[1]
    if edge_weight is None:
        edge_weight = jnp.ones((e,), dtype=x.dtype)
    deg = jnp.zeros((n,), dtype=x.dtype).at[col].add(jnp.ones((e,), dtype=x.dtype))
    dis = jnp.where(deg > 0, deg ** -0.5, 0.0).astype(x.dtype)
    norm = dis[row] * edge_weight * dis[col]
    msgs = x[row] * norm[:, None]
    return jnp.zeros_like(x).at[col].add(msgs)


if __name__ == "__main__":
    key = jax.random.PRNGKey(0)
    k1, k2, k3, k4, k5, k6 = jax.random.split(key, 6)

    num_nodes, feat_dim, num_edges = 200, 48, 1200
    x = jax.random.normal(k1, (num_nodes, feat_dim), dtype=jnp.float32)
    src = jax.random.randint(k2, (num_edges,), 0, num_nodes, dtype=jnp.int32)
    dst = jax.random.randint(k3, (num_edges,), 0, num_nodes, dtype=jnp.int32)
    edge_index = jnp.stack([src, dst], axis=0)               # [2, E]
    edge_weight = jax.random.uniform(k4, (num_edges,), dtype=jnp.float32) + 0.5

    ref = _reference(x, edge_index, edge_weight)

    # 1) default tiles, bf16 MXU operands
    out = jax.block_until_ready(lightgcn_conv(x, edge_index, edge_weight))
    assert out.shape == x.shape and out.dtype == x.dtype
    assert jnp.allclose(out, ref, atol=1e-1, rtol=1e-1), "bf16 default-tile mismatch"

    # 2) small tiles -> multi-tile grid exercising the compacted k accumulation
    out_t = jax.block_until_ready(
        lightgcn_conv(x, edge_index, edge_weight, tm_cap=128, tk_cap=128))
    assert jnp.allclose(out_t, ref, atol=1e-1, rtol=1e-1), "tiled-grid mismatch"

    # 3) f32 compute path (tight check; MXU f32 emulation keeps ~1e-3 accuracy)
    out_f32 = jax.block_until_ready(
        lightgcn_conv(x, edge_index, edge_weight, compute_dtype=jnp.float32,
                      tm_cap=128, tk_cap=128))
    assert jnp.allclose(out_f32, ref, atol=1e-2, rtol=1e-2), "f32 mismatch"

    # 4) edge_weight=None path (defaults to ones)
    out_n = jax.block_until_ready(lightgcn_conv(x, edge_index, None))
    assert jnp.allclose(out_n, _reference(x, edge_index, None),
                        atol=1e-1, rtol=1e-1), "no-weight mismatch"

    # 5) block-sparse graph (edges confined to the first 64 nodes) on a
    #    multi-tile grid -> exercises the compacted-schedule DMA-skip path
    src_s = jax.random.randint(k5, (128,), 0, 64, dtype=jnp.int32)
    dst_s = jax.random.randint(k6, (128,), 0, 64, dtype=jnp.int32)
    ei_s = jnp.stack([src_s, dst_s], axis=0)
    out_s = jax.block_until_ready(
        lightgcn_conv(x, ei_s, None, tm_cap=128, tk_cap=128))
    assert jnp.allclose(out_s, _reference(x, ei_s, None),
                        atol=1e-1, rtol=1e-1), "block-sparse mismatch"

    print("KERNEL_OK")
</pallas_src>

<mosaic_0001>
module attributes {stable_mosaic.version = 11 : i64} {
  func.func @_lightgcn_kernel(%arg0: i32, %arg1: i32, %arg2: memref<2xi32, #tpu.memory_space<smem>>, %arg3: memref<2xi32, #tpu.memory_space<smem>>, %arg4: memref<128x256xbf16, #tpu.memory_space<vmem>>, %arg5: memref<256x128xbf16, #tpu.memory_space<vmem>>, %arg6: memref<128x128xf32, #tpu.memory_space<vmem>>, %arg7: memref<128x128xf32, #tpu.memory_space<vmem>>) attributes {dimension_semantics = [#tpu.dimension_semantics<parallel>, #tpu.dimension_semantics<arbitrary>], iteration_bounds = array<i64: 2, 1>, scalar_prefetch = 2 : i64, scratch_operands = 1 : i64, tpu.core_type = #tpu.core_type<tc>, window_params = [{transform_indices = @transform_0, window_bounds = array<i64: 128, 256>}, {transform_indices = @transform_1, window_bounds = array<i64: 256, 128>}, {transform_indices = @transform_2, window_bounds = array<i64: 128, 128>}]} {
    %c0_i32 = arith.constant 0 : i32
    %0 = arith.cmpi eq, %arg1, %c0_i32 : i32
    %1 = arith.extui %0 : i1 to i32
    %c0_i32_0 = arith.constant 0 : i32
    %2 = arith.cmpi ne, %1, %c0_i32_0 : i32
    scf.if %2 {
      %cst = arith.constant 0.000000e+00 : f32
      %11 = vector.broadcast %cst : f32 to vector<128x128xf32>
      %c0 = arith.constant 0 : index
      %c0_4 = arith.constant 0 : index
      %12 = vector.load %arg7[%c0, %c0_4] : memref<128x128xf32, #tpu.memory_space<vmem>>, vector<128x128xf32>
      tpu.vector_store %arg7[%c0, %c0_4], %11 {strides = array<i32>} : memref<128x128xf32, #tpu.memory_space<vmem>>, vector<128x128xf32>,
    } else {
    }
    %3 = arith.index_cast %arg0 : i32 to index
    %4 = memref.load %arg3[%3] : memref<2xi32, #tpu.memory_space<smem>>
    %5 = arith.cmpi slt, %arg1, %4 : i32
    %6 = arith.extui %5 : i1 to i32
    %c0_i32_1 = arith.constant 0 : i32
    %7 = arith.cmpi ne, %6, %c0_i32_1 : i32
    scf.if %7 {
      %c0 = arith.constant 0 : index
      %c0_4 = arith.constant 0 : index
      %11 = vector.load %arg7[%c0, %c0_4] : memref<128x128xf32, #tpu.memory_space<vmem>>, vector<128x128xf32>
      %c0_5 = arith.constant 0 : index
      %c0_6 = arith.constant 0 : index
      %12 = vector.load %arg4[%c0_5, %c0_6] : memref<128x256xbf16, #tpu.memory_space<vmem>>, vector<128x256xbf16>
      %c0_7 = arith.constant 0 : index
      %c0_8 = arith.constant 0 : index
      %13 = vector.load %arg5[%c0_7, %c0_8] : memref<256x128xbf16, #tpu.memory_space<vmem>>, vector<256x128xbf16>
      %cst = arith.constant dense<0.000000e+00> : vector<128x128xf32>
      %14 = tpu.matmul %12, %13, %cst {dimension_numbers = #tpu.dot_dimension_numbers<[1], [0], [0], [1], [0, 0, 1, 1], [], []>} : vector<128x256xbf16>, vector<256x128xbf16>, vector<128x128xf32> -> vector<128x128xf32>
      %15 = arith.addf %11, %14 : vector<128x128xf32>
      %c0_9 = arith.constant 0 : index
      %c0_10 = arith.constant 0 : index
      %16 = vector.load %arg7[%c0_9, %c0_10] : memref<128x128xf32, #tpu.memory_space<vmem>>, vector<128x128xf32>
      tpu.vector_store %arg7[%c0_9, %c0_10], %15 {strides = array<i32>} : memref<128x128xf32, #tpu.memory_space<vmem>>, vector<128x128xf32>,
    } else {
    }
    %c0_i32_2 = arith.constant 0 : i32
    %8 = arith.cmpi eq, %arg1, %c0_i32_2 : i32
    %9 = arith.extui %8 : i1 to i32
    %c0_i32_3 = arith.constant 0 : i32
    %10 = arith.cmpi ne, %9, %c0_i32_3 : i32
    scf.if %10 {
      %c0 = arith.constant 0 : index
      %c0_4 = arith.constant 0 : index
      %11 = vector.load %arg7[%c0, %c0_4] : memref<128x128xf32, #tpu.memory_space<vmem>>, vector<128x128xf32>
      %c0_5 = arith.constant 0 : index
      %c0_6 = arith.constant 0 : index
      %12 = vector.load %arg6[%c0_5, %c0_6] : memref<128x128xf32, #tpu.memory_space<vmem>>, vector<128x128xf32>
      tpu.vector_store %arg6[%c0_5, %c0_6], %11 {strides = array<i32>} : memref<128x128xf32, #tpu.memory_space<vmem>>, vector<128x128xf32>,
    } else {
    }
    return
  }
  func.func @transform_0(%arg0: i32, %arg1: i32, %arg2: memref<2xi32, #tpu.memory_space<smem>>, %arg3: memref<2xi32, #tpu.memory_space<smem>>) -> (i32, i32) {
    %c1_i32 = arith.constant 1 : i32
    %0 = arith.muli %arg0, %c1_i32 : i32
    %1 = arith.addi %0, %arg1 : i32
    %2 = arith.index_cast %1 : i32 to index
    %3 = memref.load %arg2[%2] : memref<2xi32, #tpu.memory_space<smem>>
    %c0_i32 = arith.constant 0 : i32
    return %arg0, %3 : i32, i32
  }
  func.func @transform_1(%arg0: i32, %arg1: i32, %arg2: memref<2xi32, #tpu.memory_space<smem>>, %arg3: memref<2xi32, #tpu.memory_space<smem>>) -> (i32, i32) {
    %c1_i32 = arith.constant 1 : i32
    %0 = arith.muli %arg0, %c1_i32 : i32
    %1 = arith.addi %0, %arg1 : i32
    %2 = arith.index_cast %1 : i32 to index
    %3 = memref.load %arg2[%2] : memref<2xi32, #tpu.memory_space<smem>>
    %c0_i32 = arith.constant 0 : i32
    %c0_i32_0 = arith.constant 0 : i32
    return %3, %c0_i32 : i32, i32
  }
  func.func @transform_2(%arg0: i32, %arg1: i32, %arg2: memref<2xi32, #tpu.memory_space<smem>>, %arg3: memref<2xi32, #tpu.memory_space<smem>>) -> (i32, i32) {
    %c0_i32 = arith.constant 0 : i32
    %c0_i32_0 = arith.constant 0 : i32
    return %arg0, %c0_i32 : i32, i32
  }
}

</mosaic_0001>

<llo_original>
// kernel: tpu_custom_call.1
$region0: #{tpu_custom_call.1}
  #allocation0 [shape = 'u32[]', space=smem, size = 0x4, offset = 0x4, fixed_abs, tag = 'smem constant byte address 0x4 - core index']
  #allocation1 [shape = 'u32[144,128]{1,0:T(1,128)}', space=vmem, size = 0x12000, scoped, tag = 'internal scratch']
  #allocation2 [shape = 'f32[128,128]{1,0:T(8,128)}', space=vmem, size = 0x10000, scoped, tag = 'scratch operand']
  #allocation3 [shape = 's32[1]{0}', space=sflag, size = 0x4, scoped, tag = 'scoped memory for tpu_custom_call.1']
  #allocation4 [shape = 'u8[512]{0}', space=smem, size = 0x200, scoped, tag = 'prefetched SMEM operand 0']
  #allocation5 [shape = 'u8[512]{0}', space=smem, size = 0x200, scoped, tag = 'prefetched SMEM operand 1']
  %s0 = inlined_call_operand.hbm [shape: s32[2], index: 0, kind: input, shape index: {}]
  %s1 = inlined_call_operand.vmem [shape: s32[2], index: 1, kind: input, shape index: {}]
  %s2 = inlined_call_operand.hbm [shape: bf16[256,256], index: 2, kind: input, shape index: {}]
  %s3 = inlined_call_operand.hbm [shape: bf16[256,128], index: 3, kind: input, shape index: {}]
  %s4 = inlined_call_operand.hbm [shape: f32[256,128], index: 4, kind: output, shape index: {}]
  %s5 = sld [smem:[#allocation0]]
  $region61: #{tpu_custom_call.1} parent=0
    _
  %s7 = ssub.s32 1, %s5
  %s8 = scalar_select 0, %s7, %s5
  %10 = dma.hbm_to_smem %s0, 16, [#allocation4], [#allocation3]
  %s11 = sshll.u32 %s1, 4
  %s12 = int_to_ptr.vmem [resolvable:$true] %s11
  %14 = dma.vmem_to_smem %s12, 16, [#allocation5], [#allocation3]
  %15 = dma.done [#allocation3], 32
  %16 = sfence
  $region1: #{tpu_custom_call.1} parent=0
    #allocation6 [shape = 'u8[131072]{0}', space=vmem, size = 0x20000, scoped, tag = 'input window, operand 2']
    #allocation7 [shape = 's32[2]{0}', space=sflag, size = 0x8, scoped, tag = 'scoped memory for tpu_custom_call.1']
    #allocation8 [shape = 's32[2]{0}', space=sflag, size = 0x8, scoped, tag = 'scoped memory for tpu_custom_call.1']
    #allocation9 [shape = 'u8[131072]{0}', space=vmem, size = 0x20000, scoped, tag = 'input window, operand 3']
    #allocation10 [shape = 's32[2]{0}', space=sflag, size = 0x8, scoped, tag = 'scoped memory for tpu_custom_call.1']
    #allocation11 [shape = 'u8[131072]{0}', space=vmem, size = 0x20000, scoped, tag = 'output window, operand 0']
    %17 = vsyncpa [#allocation7], 0
    %s18 = scalar_lea.sflag [#allocation7], 1
    %19 = vsyncpa %s18, 0
    %20 = vsyncpa [#allocation10], 0
    %s21 = scalar_lea.sflag [#allocation10], 1
    %22 = vsyncpa %s21, 0
    %23 = vsyncpa [#allocation8], 0
    %s24 = scalar_lea.sflag [#allocation8], 1
    %25 = vsyncpa %s24, 0
    loop: start=0, step=1, limit=4
    $region2: #{tpu_custom_call.1} parent=1 // loop_pre_header
      _
    $region3: #{tpu_custom_call.1} parent=1 // loop_header
      %s27 = sphi 0, %s31
      %p28 = scmp.ge.s32.totalorder %s27, 4
      %s34 = sphi 0, %s46
      %s35 = sphi 0, %s42
      %s36 = sphi 0, %s34
      %s37 = sphi 0, %s35
      %s38 = sphi 0, %s36
      %s39 = sphi 0, %s37
      %s55 = sphi 0, %s57
      %s58 = sphi 0, %s55
      %s59 = sphi 0, %s58
      %s75 = sphi 0, %s59
      %s85 = sphi 0, %s87
      %s88 = sphi 0, %s85
      %s89 = sphi 0, %s88
      %s105 = sphi 0, %s89
      %s111 = sphi 0, %s113
      %s114 = sphi 0, %s111
      %s115 = sphi 0, %s114
      %s131 = sphi 0, %s115
    $region4: #{tpu_custom_call.1} parent=1 // loop_header_branch
      %30 = sbr.rel (%p28) target = $region8
    $region5: #{tpu_custom_call.1} parent=1 // loop_body
      %s32 = ssub.s32 %s27, 1
      %s33 = ssub.s32 %s27, 2
      %s40 = sadd.s32 1, %s35
      %p41 = scmp.ge.s32.totalorder %s40, 1
      %s42 = scalar_select %p41, 0, %s40
      %s43 = sadd.s32 1, %s34
      %s44 = scalar_select %p41, %s43, %s34
      %p45 = scmp.ge.s32.totalorder %s44, 2
      %s46 = scalar_select %p45, 0, %s44
      %s47 = sadd.s32 %s34, %s35
      %s48 = sld [smem:[#allocation4 + %s47]]
      %s49 = sadd.s32 %s46, %s42
      %s50 = sld [smem:[#allocation4 + %s49]]
      %s51 = ssub.s32 %s34, %s46
      %s52 = ssub.s32 %s48, %s50
      %s53 = sor.u32 %s51, %s52
      %p54 = scmp.eq.s32.totalorder %s53, 0
      %s56 = sadd.s32 %s55, 1
      %s57 = scalar_select %p54, %s55, %s56
      %p60 = pneg %p54
      %p61 = scmp.eq.s32.totalorder %s27, 1
      %p62 = por %p60, %p61
      %p63 = scmp.ne.s32.totalorder %s55, %s58
      %p64 = scmp.eq.s32.totalorder %s27, 0
      %p65 = por %p63, %p64
      %p66 = scmp.ne.s32.totalorder %s55, %s58
      %p67 = scmp.eq.s32.totalorder %s32, 1
      %p68 = por %p66, %p67
      %p69 = scmp.ne.s32.totalorder %s58, %s59
      %p70 = scmp.eq.s32.totalorder %s32, 0
      %p71 = por %p69, %p70
      %p72 = scmp.ne.s32.totalorder %s58, %s59
      %p73 = scmp.eq.s32.totalorder %s33, 1
      %p74 = por %p72, %p73
      %p76 = scmp.ne.s32.totalorder %s59, %s75
      %p77 = scmp.eq.s32.totalorder %s33, 0
      %p78 = por %p76, %p77
      %s79 = sadd.s32 %s34, %s35
      %s80 = sld [smem:[#allocation4 + %s79]]
      %s81 = sadd.s32 %s46, %s42
      %s82 = sld [smem:[#allocation4 + %s81]]
      %s83 = ssub.s32 %s80, %s82
      %p84 = scmp.eq.s32.totalorder %s83, 0
      %s86 = sadd.s32 %s85, 1
      %s87 = scalar_select %p84, %s85, %s86
      %p90 = pneg %p84
      %p91 = scmp.eq.s32.totalorder %s27, 1
      %p92 = por %p90, %p91
      %p93 = scmp.ne.s32.totalorder %s85, %s88
      %p94 = scmp.eq.s32.totalorder %s27, 0
      %p95 = por %p93, %p94
      %p96 = scmp.ne.s32.totalorder %s85, %s88
      %p97 = scmp.eq.s32.totalorder %s32, 1
      %p98 = por %p96, %p97
      %p99 = scmp.ne.s32.totalorder %s88, %s89
      %p100 = scmp.eq.s32.totalorder %s32, 0
      %p101 = por %p99, %p100
      %p102 = scmp.ne.s32.totalorder %s88, %s89
      %p103 = scmp.eq.s32.totalorder %s33, 1
      %p104 = por %p102, %p103
      %p106 = scmp.ne.s32.totalorder %s89, %s105
      %p107 = scmp.eq.s32.totalorder %s33, 0
      %p108 = por %p106, %p107
      %s109 = ssub.s32 %s34, %s46
      %p110 = scmp.eq.s32.totalorder %s109, 0
      %s112 = sadd.s32 %s111, 1
      %s113 = scalar_select %p110, %s111, %s112
      %p116 = pneg %p110
      %p117 = scmp.eq.s32.totalorder %s27, 1
      %p118 = por %p116, %p117
      %p119 = scmp.ne.s32.totalorder %s111, %s114
      %p120 = scmp.eq.s32.totalorder %s27, 0
      %p121 = por %p119, %p120
      %p122 = scmp.ne.s32.totalorder %s111, %s114
      %p123 = scmp.eq.s32.totalorder %s32, 1
      %p124 = por %p122, %p123
      %p125 = scmp.ne.s32.totalorder %s114, %s115
      %p126 = scmp.eq.s32.totalorder %s32, 0
      %p127 = por %p125, %p126
      %p128 = scmp.ne.s32.totalorder %s114, %s115
      %p129 = scmp.eq.s32.totalorder %s33, 1
      %p130 = por %p128, %p129
      %p132 = scmp.ne.s32.totalorder %s115, %s131
      %p133 = scmp.eq.s32.totalorder %s33, 0
      %p134 = por %p132, %p133
      %p135 = scmp.le.s32.totalorder 1, %s27
      %p136 = scmp.lt.s32.totalorder %s27, 3
      %p137 = pnand %p135, %p136
      %p138 = pneg %p137
      // Predicated region
      $region9: #{tpu_custom_call.1} parent=5 // pred_check
        _
      $region10: #{tpu_custom_call.1} parent=5 // pred_check_branch
        %140 = sbr.rel (%p137) target = $region12
      $region11: #{tpu_custom_call.1} parent=5 // pred_region
        %s141 = ssub.s32 %s27, 1
      $region12: #{tpu_custom_call.1} parent=5 // pred_fallthru
        _
      %p142 = scmp.lt.s32.totalorder %s27, 2
      // Predicated region
      $region13: #{tpu_custom_call.1} parent=5 // pred_check
        %p143 = pneg %p142
      $region14: #{tpu_custom_call.1} parent=5 // pred_check_branch
        %145 = sbr.rel (%p143) target = $region16
      $region15: #{tpu_custom_call.1} parent=5 // pred_region
        // Predicated region
        $region17: #{tpu_custom_call.1} parent=15 // pred_check
          %p146 = pneg %p65
        $region18: #{tpu_custom_call.1} parent=15 // pred_check_branch
          %148 = sbr.rel (%p146) target = $region20
        $region19: #{tpu_custom_call.1} parent=15 // pred_region
          %s149 = sand.u32 %s55, 1
          %s150 = scalar_lea.sflag [#allocation7], %s149
          %s151 = sand.u32 %s55, 1
          %s152 = smul.addr %s151, 128
          %s153 = scalar_lea.vmem [#allocation6], %s152
          %s154 = sadd.s32 %s34, %s35
          %s155 = sld [smem:[#allocation4 + %s154]]
          %s156 = smul.u32 16, %s34
          %s157 = smul.u32 2, %s155
          %s159 = ssub.s32 2048, 2048
          %160 = vsyncadd %s150, %s159
          %s161 = smul.addr %s156, 2
          %s162 = sadd.s32 %s157, %s161
          %s163 = smul.addr %s162, 64
          %s164 = scalar_lea.hbm %s2, %s163
          %s165 = sshll.u32 %s153, 4
          %s166 = int_to_ptr.vmem [resolvable:$true] %s165
          %171 = dma.hbm_to_vmem [thread:$0]  %s164, 2048, %s166, %s150, 128, 128, 8
        $region20: #{tpu_custom_call.1} parent=15 // pred_fallthru
          _
        // Predicated region
        $region21: #{tpu_custom_call.1} parent=15 // pred_check
          %p172 = pneg %p95
        $region22: #{tpu_custom_call.1} parent=15 // pred_check_branch
          %174 = sbr.rel (%p172) target = $region24
        $region23: #{tpu_custom_call.1} parent=15 // pred_region
          %s175 = sand.u32 %s85, 1
          %s176 = scalar_lea.sflag [#allocation10], %s175
          %s177 = sand.u32 %s85, 1
          %s178 = smul.addr %s177, 128
          %s179 = scalar_lea.vmem [#allocation9], %s178
          %s180 = sadd.s32 %s34, %s35
          %s181 = sld [smem:[#allocation4 + %s180]]
          %s182 = smul.u32 32, %s181
          %s184 = ssub.s32 2048, 2048
          %185 = vsyncadd %s176, %s184
          %s186 = smul.addr %s182, 64
          %s187 = scalar_lea.hbm %s3, %s186
          %s188 = sshll.u32 %s179, 4
          %s189 = int_to_ptr.vmem [resolvable:$true] %s188
          %194 = dma.hbm_to_vmem [thread:$0]  %s187, 2048, %s189, %s176, 64, 64, 4
        $region24: #{tpu_custom_call.1} parent=15 // pred_fallthru
          _
      $region16: #{tpu_custom_call.1} parent=5 // pred_fallthru
        _
      %p195 = scmp.le.s32.totalorder 1, %s27
      %p196 = scmp.lt.s32.totalorder %s27, 3
      %p197 = pnand %p195, %p196
      %p198 = pneg %p197
      // Predicated region
      $region25: #{tpu_custom_call.1} parent=5 // pred_check
        _
      $region26: #{tpu_custom_call.1} parent=5 // pred_check_branch
        %200 = sbr.rel (%p197) target = $region28
      $region27: #{tpu_custom_call.1} parent=5 // pred_region
        %s201 = ssub.s32 %s27, 1
        %s202 = sand.u32 %s58, 1
        %s203 = scalar_lea.sflag [#allocation7], %s202
        %s204 = sand.u32 %s58, 1
        %s205 = smul.addr %s204, 128
        %s206 = scalar_lea.vmem [#allocation6], %s205
        // Predicated region
        $region29: #{tpu_custom_call.1} parent=27 // pred_check
          %p207 = pneg %p71
        $region30: #{tpu_custom_call.1} parent=27 // pred_check_branch
          %209 = sbr.rel (%p207) target = $region32
        $region31: #{tpu_custom_call.1} parent=27 // pred_region
          %210 = dma.done %s203, 2048
        $region32: #{tpu_custom_call.1} parent=27 // pred_fallthru
          _
        %s211 = sand.u32 %s88, 1
        %s212 = scalar_lea.sflag [#allocation10], %s211
        %s213 = sand.u32 %s88, 1
        %s214 = smul.addr %s213, 128
        %s215 = scalar_lea.vmem [#allocation9], %s214
        // Predicated region
        $region33: #{tpu_custom_call.1} parent=27 // pred_check
          %p216 = pneg %p101
        $region34: #{tpu_custom_call.1} parent=27 // pred_check_branch
          %218 = sbr.rel (%p216) target = $region36
        $region35: #{tpu_custom_call.1} parent=27 // pred_region
          %219 = dma.done %s212, 2048
        $region36: #{tpu_custom_call.1} parent=27 // pred_fallthru
          _
        %s220 = sand.u32 %s58, 1
        %s221 = scalar_lea.sflag [#allocation7], %s220
        %s222 = sand.u32 %s58, 1
        %s223 = smul.addr %s222, 128
        %s224 = scalar_lea.vmem [#allocation6], %s223
        %p225 = pneg %p71
        %p226 = pneg %p68
        %s227 = sand.u32 %s88, 1
        %s228 = scalar_lea.sflag [#allocation10], %s227
        %s229 = sand.u32 %s88, 1
        %s230 = smul.addr %s229, 128
        %s231 = scalar_lea.vmem [#allocation9], %s230
        %p232 = pneg %p101
        %p233 = pneg %p98
        %p234 = pneg %p127
        %p235 = pneg %p124
        %s236 = sand.u32 %s114, 1
        %s237 = scalar_lea.sflag [#allocation8], %s236
        %s238 = sand.u32 %s114, 1
        %s239 = smul.addr %s238, 128
        %s240 = scalar_lea.vmem [#allocation11], %s239
        %s241 = sadd.s32 %s36, %s37
        %s242 = sld [smem:[#allocation4 + %s241]]
        %s243 = smul.u32 16, %s36
        %s244 = smul.u32 2, %s242
        %s245 = sadd.s32 %s36, %s37
        %s246 = sld [smem:[#allocation4 + %s245]]
        %s247 = smul.u32 32, %s246
        %s248 = smul.u32 16, %s36
        %p250 = scmp.eq.s32.totalorder %s37, 0
        // Predicated region
        $region37: #{tpu_custom_call.1} parent=27 // pred_check
          %p251 = pneg %p250
        $region38: #{tpu_custom_call.1} parent=27 // pred_check_branch
          %253 = sbr.rel (%p251) target = $region40
        $region39: #{tpu_custom_call.1} parent=27 // pred_region
          %254 = vst [vmem:[#allocation2] sm:$0xff] 0.0
          %255 = vst [vmem:[#allocation2 + $0x8] sm:$0xff] 0.0
          %256 = vst [vmem:[#allocation2 + $0x10] sm:$0xff] 0.0
          %257 = vst [vmem:[#allocation2 + $0x18] sm:$0xff] 0.0
          %258 = vst [vmem:[#allocation2 + $0x20] sm:$0xff] 0.0
          %259 = vst [vmem:[#allocation2 + $0x28] sm:$0xff] 0.0
          %260 = vst [vmem:[#allocation2 + $0x30] sm:$0xff] 0.0
          %261 = vst [vmem:[#allocation2 + $0x38] sm:$0xff] 0.0
          %262 = vst [vmem:[#allocation2 + $0x40] sm:$0xff] 0.0
          %263 = vst [vmem:[#allocation2 + $0x48] sm:$0xff] 0.0
          %264 = vst [vmem:[#allocation2 + $0x50] sm:$0xff] 0.0
          %265 = vst [vmem:[#allocation2 + $0x58] sm:$0xff] 0.0
          %266 = vst [vmem:[#allocation2 + $0x60] sm:$0xff] 0.0
          %267 = vst [vmem:[#allocation2 + $0x68] sm:$0xff] 0.0
          %268 = vst [vmem:[#allocation2 + $0x70] sm:$0xff] 0.0
          %269 = vst [vmem:[#allocation2 + $0x78] sm:$0xff] 0.0
        $region40: #{tpu_custom_call.1} parent=27 // pred_fallthru
          _
        %s270 = sld [smem:[#allocation5 + %s36]]
        %p271 = scmp.lt.s32.totalorder %s37, %s270
        // Predicated region
        $region41: #{tpu_custom_call.1} parent=27 // pred_check
          %p272 = pneg %p271
        $region42: #{tpu_custom_call.1} parent=27 // pred_check_branch
          %274 = sbr.rel (%p272) target = $region44
        $region43: #{tpu_custom_call.1} parent=27 // pred_region
          %v275 = vld [vmem:[#allocation2] sm:$0xff]
          %v276 = vld [vmem:[#allocation2 + $0x8] sm:$0xff]
          %v277 = vld [vmem:[#allocation2 + $0x10] sm:$0xff]
          %v278 = vld [vmem:[#allocation2 + $0x18] sm:$0xff]
          %v279 = vld [vmem:[#allocation2 + $0x20] sm:$0xff]
          %v280 = vld [vmem:[#allocation2 + $0x28] sm:$0xff]
          %v281 = vld [vmem:[#allocation2 + $0x30] sm:$0xff]
          %v282 = vld [vmem:[#allocation2 + $0x38] sm:$0xff]
          %v283 = vld [vmem:[#allocation2 + $0x40] sm:$0xff]
          %v284 = vld [vmem:[#allocation2 + $0x48] sm:$0xff]
          %v285 = vld [vmem:[#allocation2 + $0x50] sm:$0xff]
          %v286 = vld [vmem:[#allocation2 + $0x58] sm:$0xff]
          %v287 = vld [vmem:[#allocation2 + $0x60] sm:$0xff]
          %v288 = vld [vmem:[#allocation2 + $0x68] sm:$0xff]
          %v289 = vld [vmem:[#allocation2 + $0x70] sm:$0xff]
          %v290 = vld [vmem:[#allocation2 + $0x78] sm:$0xff]
          %v291 = vld [vmem:[%s206] sm:$0xff]
          %v292 = vld [vmem:[%s206 + $0x8] sm:$0xff]
          %v293 = vld [vmem:[%s206 + $0x10] sm:$0xff]
          %v294 = vld [vmem:[%s206 + $0x18] sm:$0xff]
          %v295 = vld [vmem:[%s206 + $0x20] sm:$0xff]
          %v296 = vld [vmem:[%s206 + $0x28] sm:$0xff]
          %v297 = vld [vmem:[%s206 + $0x30] sm:$0xff]
          %v298 = vld [vmem:[%s206 + $0x38] sm:$0xff]
          %v299 = vld [vmem:[%s206 + $0x40] sm:$0xff]
          %v300 = vld [vmem:[%s206 + $0x48] sm:$0xff]
          %v301 = vld [vmem:[%s206 + $0x50] sm:$0xff]
          %v302 = vld [vmem:[%s206 + $0x58] sm:$0xff]
          %v303 = vld [vmem:[%s206 + $0x60] sm:$0xff]
          %v304 = vld [vmem:[%s206 + $0x68] sm:$0xff]
          %v305 = vld [vmem:[%s206 + $0x70] sm:$0xff]
          %v306 = vld [vmem:[%s206 + $0x78] sm:$0xff]
          %v307 = vld [vmem:[%s215] sm:$0xf]
          %v308 = vld [vmem:[%s215 + $0x4] sm:$0xf]
          %v309 = vld [vmem:[%s215 + $0x8] sm:$0xf]
          %v310 = vld [vmem:[%s215 + $0xc] sm:$0xf]
          %v311 = vld [vmem:[%s215 + $0x10] sm:$0xf]
          %v312 = vld [vmem:[%s215 + $0x14] sm:$0xf]
          %v313 = vld [vmem:[%s215 + $0x18] sm:$0xf]
          %v314 = vld [vmem:[%s215 + $0x1c] sm:$0xf]
          %v315 = vld [vmem:[%s215 + $0x20] sm:$0xf]
          %v316 = vld [vmem:[%s215 + $0x24] sm:$0xf]
          %v317 = vld [vmem:[%s215 + $0x28] sm:$0xf]
          %v318 = vld [vmem:[%s215 + $0x2c] sm:$0xf]
          %v319 = vld [vmem:[%s215 + $0x30] sm:$0xf]
          %v320 = vld [vmem:[%s215 + $0x34] sm:$0xf]
          %v321 = vld [vmem:[%s215 + $0x38] sm:$0xf]
          %v322 = vld [vmem:[%s215 + $0x3c] sm:$0xf]
          %v323 = vld [vmem:[%s215 + $0x40] sm:$0xf]
          %v324 = vld [vmem:[%s215 + $0x44] sm:$0xf]
          %v325 = vld [vmem:[%s215 + $0x48] sm:$0xf]
          %v326 = vld [vmem:[%s215 + $0x4c] sm:$0xf]
          %v327 = vld [vmem:[%s215 + $0x50] sm:$0xf]
          %v328 = vld [vmem:[%s215 + $0x54] sm:$0xf]
          %v329 = vld [vmem:[%s215 + $0x58] sm:$0xf]
          %v330 = vld [vmem:[%s215 + $0x5c] sm:$0xf]
          %v331 = vld [vmem:[%s215 + $0x60] sm:$0xf]
          %v332 = vld [vmem:[%s215 + $0x64] sm:$0xf]
          %v333 = vld [vmem:[%s215 + $0x68] sm:$0xf]
          %v334 = vld [vmem:[%s215 + $0x6c] sm:$0xf]
          %v335 = vld [vmem:[%s215 + $0x70] sm:$0xf]
          %v336 = vld [vmem:[%s215 + $0x74] sm:$0xf]
          %v337 = vld [vmem:[%s215 + $0x78] sm:$0xf]
          %v338 = vld [vmem:[%s215 + $0x7c] sm:$0xf]
          %v355 = vunpack.c.l.b16 %v291
          %v356 = vunpack.c.h.b16 %v291
          %v357 = vunpack.c.l.b16 %v292
          %v358 = vunpack.c.h.b16 %v292
          %v359 = vunpack.c.l.b16 %v293
          %v360 = vunpack.c.h.b16 %v293
          %v361 = vunpack.c.l.b16 %v294
          %v362 = vunpack.c.h.b16 %v294
          %v363 = vunpack.c.l.b16 %v295
          %v364 = vunpack.c.h.b16 %v295
          %v365 = vunpack.c.l.b16 %v296
          %v366 = vunpack.c.h.b16 %v296
          %v367 = vunpack.c.l.b16 %v297
          %v368 = vunpack.c.h.b16 %v297
          %v369 = vunpack.c.l.b16 %v298
          %v370 = vunpack.c.h.b16 %v298
          %v371 = vunpack.c.l.b16 %v299
          %v372 = vunpack.c.h.b16 %v299
          %v373 = vunpack.c.l.b16 %v300
          %v374 = vunpack.c.h.b16 %v300
          %v375 = vunpack.c.l.b16 %v301
          %v376 = vunpack.c.h.b16 %v301
          %v377 = vunpack.c.l.b16 %v302
          %v378 = vunpack.c.h.b16 %v302
          %v379 = vunpack.c.l.b16 %v303
          %v380 = vunpack.c.h.b16 %v303
          %v381 = vunpack.c.l.b16 %v304
          %v382 = vunpack.c.h.b16 %v304
          %v383 = vunpack.c.l.b16 %v305
          %v384 = vunpack.c.h.b16 %v305
          %v385 = vunpack.c.l.b16 %v306
          %v386 = vunpack.c.h.b16 %v306
          %v387 = vpack.c.b16 %v357, %v355
          %v388 = vpack.c.b16 %v358, %v356
          %v389 = vpack.c.b16 %v361, %v359
          %v390 = vpack.c.b16 %v362, %v360
          %v391 = vpack.c.b16 %v365, %v363
          %v392 = vpack.c.b16 %v366, %v364
          %v393 = vpack.c.b16 %v369, %v367
          %v394 = vpack.c.b16 %v370, %v368
          %v395 = vpack.c.b16 %v373, %v371
          %v396 = vpack.c.b16 %v374, %v372
          %v397 = vpack.c.b16 %v377, %v375
          %v398 = vpack.c.b16 %v378, %v376
          %v399 = vpack.c.b16 %v381, %v379
          %v400 = vpack.c.b16 %v382, %v380
          %v401 = vpack.c.b16 %v385, %v383
          %v402 = vpack.c.b16 %v386, %v384
          %v451 = vunpack.c.l.b16 %v307
          %v452 = vunpack.c.l.b16 %v308
          %v453 = vunpack.c.l.b16 %v309
          %v454 = vunpack.c.l.b16 %v310
          %v455 = vunpack.c.l.b16 %v311
          %v456 = vunpack.c.l.b16 %v312
          %v457 = vunpack.c.l.b16 %v313
          %v458 = vunpack.c.l.b16 %v314
          %v459 = vunpack.c.l.b16 %v315
          %v460 = vunpack.c.l.b16 %v316
          %v461 = vunpack.c.l.b16 %v317
          %v462 = vunpack.c.l.b16 %v318
          %v463 = vunpack.c.l.b16 %v319
          %v464 = vunpack.c.l.b16 %v320
          %v465 = vunpack.c.l.b16 %v321
          %v466 = vunpack.c.l.b16 %v322
          %v467 = vunpack.c.l.b16 %v323
          %v468 = vunpack.c.l.b16 %v324
          %v469 = vunpack.c.l.b16 %v325
          %v470 = vunpack.c.l.b16 %v326
          %v471 = vunpack.c.l.b16 %v327
          %v472 = vunpack.c.l.b16 %v328
          %v473 = vunpack.c.l.b16 %v329
          %v474 = vunpack.c.l.b16 %v330
          %v475 = vunpack.c.l.b16 %v331
          %v476 = vunpack.c.l.b16 %v332
          %v477 = vunpack.c.l.b16 %v333
          %v478 = vunpack.c.l.b16 %v334
          %v479 = vunpack.c.l.b16 %v335
          %v480 = vunpack.c.l.b16 %v336
          %v481 = vunpack.c.l.b16 %v337
          %v482 = vunpack.c.l.b16 %v338
          %v483 = vpack.c.b16 %v452, %v451
          %v484 = vpack.c.b16 %v454, %v453
          %v485 = vpack.c.b16 %v456, %v455
          %v486 = vpack.c.b16 %v458, %v457
          %v487 = vpack.c.b16 %v460, %v459
          %v488 = vpack.c.b16 %v462, %v461
          %v489 = vpack.c.b16 %v464, %v463
          %v490 = vpack.c.b16 %v466, %v465
          %v491 = vpack.c.b16 %v468, %v467
          %v492 = vpack.c.b16 %v470, %v469
          %v493 = vpack.c.b16 %v472, %v471
          %v494 = vpack.c.b16 %v474, %v473
          %v495 = vpack.c.b16 %v476, %v475
          %v496 = vpack.c.b16 %v478, %v477
          %v497 = vpack.c.b16 %v480, %v479
          %v498 = vpack.c.b16 %v482, %v481
          %515 = vmatprep.subr.bf16.mxu0 0
          %516 = vmatpush1.bf16.msra.mxu0 %v490
          %517 = vmatprep.subr.bf16.mxu0 0
          %518 = vmatpush1.bf16.msra.mxu0 %v489
          %519 = vmatprep.subr.bf16.mxu0 0
          %520 = vmatpush1.bf16.msra.mxu0 %v488
          %521 = vmatprep.subr.bf16.mxu0 0
          %522 = vmatpush1.bf16.msra.mxu0 %v487
          %523 = vmatprep.subr.bf16.mxu0 0
          %524 = vmatpush1.bf16.msra.mxu0 %v486
          %525 = vmatprep.subr.bf16.mxu0 0
          %526 = vmatpush1.bf16.msra.mxu0 %v485
          %527 = vmatprep.subr.bf16.mxu0 0
          %528 = vmatpush1.bf16.msra.mxu0 %v484
          %529 = vmatprep.subr.bf16.mxu0 0
          %530 = vmatpush1.bf16.msra.mxu0 %v483
          %531 = vmatprep.subr.bf16.mxu0 0
          %532 = vmatpush2.bf16.msra.mxu0 %v498
          %533 = vmatprep.subr.bf16.mxu0 0
          %534 = vmatpush2.bf16.msra.mxu0 %v497
          %535 = vmatprep.subr.bf16.mxu0 0
          %536 = vmatpush2.bf16.msra.mxu0 %v496
          %537 = vmatprep.subr.bf16.mxu0 0
          %538 = vmatpush2.bf16.msra.mxu0 %v495
          %539 = vmatprep.subr.bf16.mxu0 0
          %540 = vmatpush2.bf16.msra.mxu0 %v494
          %541 = vmatprep.subr.bf16.mxu0 0
          %542 = vmatpush2.bf16.msra.mxu0 %v493
          %543 = vmatprep.subr.bf16.mxu0 0
          %544 = vmatpush2.bf16.msra.mxu0 %v492
          %545 = vmatprep.subr.bf16.mxu0 0
          %546 = vmatpush2.bf16.msra.mxu0 %v491
          %547 = vmatprep.mubr.bf16.mxu0 %v388
          %548 = vmatmul.mubr.bf16.gmra.mxu0 %v387
          %v549 = vpop.f32.mrf.mxu0
          %v550 = vadd.f32 0.0, %v549
          %v551 = vpop.f32.mrf.mxu0
          %v552 = vpop.f32.mrf.mxu0
          %v553 = vadd.f32 0.0, %v552
          %v554 = vpop.f32.mrf.mxu0
          %555 = vmatprep.mubr.bf16.mxu0 %v390
          %556 = vmatmul.mubr.bf16.gmra.mxu0 %v389
          %v557 = vpop.f32.mrf.mxu0
          %v558 = vadd.f32 0.0, %v557
          %v559 = vpop.f32.mrf.mxu0
          %v560 = vpop.f32.mrf.mxu0
          %v561 = vadd.f32 0.0, %v560
          %v562 = vpop.f32.mrf.mxu0
          %563 = vmatprep.mubr.bf16.mxu0 %v392
          %564 = vmatmul.mubr.bf16.gmra.mxu0 %v391
          %v565 = vpop.f32.mrf.mxu0
          %v566 = vadd.f32 0.0, %v565
          %v567 = vpop.f32.mrf.mxu0
          %v568 = vpop.f32.mrf.mxu0
          %v569 = vadd.f32 0.0, %v568
          %v570 = vpop.f32.mrf.mxu0
          %571 = vmatprep.mubr.bf16.mxu0 %v394
          %572 = vmatmul.mubr.bf16.gmra.mxu0 %v393
          %v573 = vpop.f32.mrf.mxu0
          %v574 = vadd.f32 0.0, %v573
          %v575 = vpop.f32.mrf.mxu0
          %v576 = vpop.f32.mrf.mxu0
          %v577 = vadd.f32 0.0, %v576
          %v578 = vpop.f32.mrf.mxu0
          %579 = vmatprep.mubr.bf16.mxu0 %v396
          %580 = vmatmul.mubr.bf16.gmra.mxu0 %v395
          %v581 = vpop.f32.mrf.mxu0
          %v582 = vadd.f32 0.0, %v581
          %v583 = vpop.f32.mrf.mxu0
          %v584 = vpop.f32.mrf.mxu0
          %v585 = vadd.f32 0.0, %v584
          %v586 = vpop.f32.mrf.mxu0
          %587 = vmatprep.mubr.bf16.mxu0 %v398
          %588 = vmatmul.mubr.bf16.gmra.mxu0 %v397
          %v589 = vpop.f32.mrf.mxu0
          %v590 = vadd.f32 0.0, %v589
          %v591 = vpop.f32.mrf.mxu0
          %v592 = vpop.f32.mrf.mxu0
          %v593 = vadd.f32 0.0, %v592
          %v594 = vpop.f32.mrf.mxu0
          %595 = vmatprep.mubr.bf16.mxu0 %v400
          %596 = vmatmul.mubr.bf16.gmra.mxu0 %v399
          %v597 = vpop.f32.mrf.mxu0
          %v598 = vadd.f32 0.0, %v597
          %v599 = vpop.f32.mrf.mxu0
          %v600 = vpop.f32.mrf.mxu0
          %v601 = vadd.f32 0.0, %v600
          %v602 = vpop.f32.mrf.mxu0
          %603 = vmatprep.mubr.bf16.mxu0 %v402
          %604 = vmatmul.mubr.bf16.gmra.mxu0 %v401
          %v605 = vpop.f32.mrf.mxu0
          %v606 = vadd.f32 0.0, %v605
          %v607 = vpop.f32.mrf.mxu0
          %v608 = vpop.f32.mrf.mxu0
          %v609 = vadd.f32 0.0, %v608
          %v610 = vpop.f32.mrf.mxu0
          %611 = vdwg.mxu0
          %v612 = vadd.f32 %v275, %v550
          %v613 = vadd.f32 %v276, %v553
          %v614 = vadd.f32 %v277, %v558
          %v615 = vadd.f32 %v278, %v561
          %v616 = vadd.f32 %v279, %v566
          %v617 = vadd.f32 %v280, %v569
          %v618 = vadd.f32 %v281, %v574
          %v619 = vadd.f32 %v282, %v577
          %v620 = vadd.f32 %v283, %v582
          %v621 = vadd.f32 %v284, %v585
          %v622 = vadd.f32 %v285, %v590
          %v623 = vadd.f32 %v286, %v593
          %v624 = vadd.f32 %v287, %v598
          %v625 = vadd.f32 %v288, %v601
          %v626 = vadd.f32 %v289, %v606
          %v627 = vadd.f32 %v290, %v609
          %628 = vst [vmem:[#allocation2] sm:$0xff] %v612
          %629 = vst [vmem:[#allocation2 + $0x8] sm:$0xff] %v613
          %630 = vst [vmem:[#allocation2 + $0x10] sm:$0xff] %v614
          %631 = vst [vmem:[#allocation2 + $0x18] sm:$0xff] %v615
          %632 = vst [vmem:[#allocation2 + $0x20] sm:$0xff] %v616
          %633 = vst [vmem:[#allocation2 + $0x28] sm:$0xff] %v617
          %634 = vst [vmem:[#allocation2 + $0x30] sm:$0xff] %v618
          %635 = vst [vmem:[#allocation2 + $0x38] sm:$0xff] %v619
          %636 = vst [vmem:[#allocation2 + $0x40] sm:$0xff] %v620
          %637 = vst [vmem:[#allocation2 + $0x48] sm:$0xff] %v621
          %638 = vst [vmem:[#allocation2 + $0x50] sm:$0xff] %v622
          %639 = vst [vmem:[#allocation2 + $0x58] sm:$0xff] %v623
          %640 = vst [vmem:[#allocation2 + $0x60] sm:$0xff] %v624
          %641 = vst [vmem:[#allocation2 + $0x68] sm:$0xff] %v625
          %642 = vst [vmem:[#allocation2 + $0x70] sm:$0xff] %v626
          %643 = vst [vmem:[#allocation2 + $0x78] sm:$0xff] %v627
        $region44: #{tpu_custom_call.1} parent=27 // pred_fallthru
          _
        // Predicated region
        $region45: #{tpu_custom_call.1} parent=27 // pred_check
          %p644 = pneg %p250
        $region46: #{tpu_custom_call.1} parent=27 // pred_check_branch
          %646 = sbr.rel (%p644) target = $region48
        $region47: #{tpu_custom_call.1} parent=27 // pred_region
          %v647 = vld [vmem:[#allocation2] sm:$0xff]
          %v648 = vld [vmem:[#allocation2 + $0x8] sm:$0xff]
          %v649 = vld [vmem:[#allocation2 + $0x10] sm:$0xff]
          %v650 = vld [vmem:[#allocation2 + $0x18] sm:$0xff]
          %v651 = vld [vmem:[#allocation2 + $0x20] sm:$0xff]
          %v652 = vld [vmem:[#allocation2 + $0x28] sm:$0xff]
          %v653 = vld [vmem:[#allocation2 + $0x30] sm:$0xff]
          %v654 = vld [vmem:[#allocation2 + $0x38] sm:$0xff]
          %v655 = vld [vmem:[#allocation2 + $0x40] sm:$0xff]
          %v656 = vld [vmem:[#allocation2 + $0x48] sm:$0xff]
          %v657 = vld [vmem:[#allocation2 + $0x50] sm:$0xff]
          %v658 = vld [vmem:[#allocation2 + $0x58] sm:$0xff]
          %v659 = vld [vmem:[#allocation2 + $0x60] sm:$0xff]
          %v660 = vld [vmem:[#allocation2 + $0x68] sm:$0xff]
          %v661 = vld [vmem:[#allocation2 + $0x70] sm:$0xff]
          %v662 = vld [vmem:[#allocation2 + $0x78] sm:$0xff]
          %663 = vst [vmem:[%s240] sm:$0xff] %v647
          %664 = vst [vmem:[%s240 + $0x8] sm:$0xff] %v648
          %665 = vst [vmem:[%s240 + $0x10] sm:$0xff] %v649
          %666 = vst [vmem:[%s240 + $0x18] sm:$0xff] %v650
          %667 = vst [vmem:[%s240 + $0x20] sm:$0xff] %v651
          %668 = vst [vmem:[%s240 + $0x28] sm:$0xff] %v652
          %669 = vst [vmem:[%s240 + $0x30] sm:$0xff] %v653
          %670 = vst [vmem:[%s240 + $0x38] sm:$0xff] %v654
          %671 = vst [vmem:[%s240 + $0x40] sm:$0xff] %v655
          %672 = vst [vmem:[%s240 + $0x48] sm:$0xff] %v656
          %673 = vst [vmem:[%s240 + $0x50] sm:$0xff] %v657
          %674 = vst [vmem:[%s240 + $0x58] sm:$0xff] %v658
          %675 = vst [vmem:[%s240 + $0x60] sm:$0xff] %v659
          %676 = vst [vmem:[%s240 + $0x68] sm:$0xff] %v660
          %677 = vst [vmem:[%s240 + $0x70] sm:$0xff] %v661
          %678 = vst [vmem:[%s240 + $0x78] sm:$0xff] %v662
        $region48: #{tpu_custom_call.1} parent=27 // pred_fallthru
          _
        %s679 = sand.u32 %s114, 1
        %s680 = scalar_lea.sflag [#allocation8], %s679
        %s681 = sand.u32 %s114, 1
        %s682 = smul.addr %s681, 128
        %s683 = scalar_lea.vmem [#allocation11], %s682
        // Predicated region
        $region49: #{tpu_custom_call.1} parent=27 // pred_check
          %p684 = pneg %p124
        $region50: #{tpu_custom_call.1} parent=27 // pred_check_branch
          %686 = sbr.rel (%p684) target = $region52
        $region51: #{tpu_custom_call.1} parent=27 // pred_region
          %s687 = smul.u32 16, %s36
          %s689 = ssub.s32 2048, 2048
          %690 = vsyncadd %s680, %s689
          %s691 = smul.addr %s687, 128
          %s692 = scalar_lea.hbm %s4, %s691
          %s693 = sshll.u32 %s683, 4
          %s694 = int_to_ptr.vmem [resolvable:$true] %s693
          %699 = dma.vmem_to_hbm [thread:$0]  %s694, 2048, %s692, %s680, 128, 128, 8
        $region52: #{tpu_custom_call.1} parent=27 // pred_fallthru
          _
      $region28: #{tpu_custom_call.1} parent=5 // pred_fallthru
        _
      %p700 = scmp.le.s32.totalorder 2, %s27
      // Predicated region
      $region53: #{tpu_custom_call.1} parent=5 // pred_check
        %p701 = pneg %p700
      $region54: #{tpu_custom_call.1} parent=5 // pred_check_branch
        %703 = sbr.rel (%p701) target = $region56
      $region55: #{tpu_custom_call.1} parent=5 // pred_region
        %s704 = ssub.s32 %s27, 2
        // Predicated region
        $region57: #{tpu_custom_call.1} parent=55 // pred_check
          %p705 = pneg %p130
        $region58: #{tpu_custom_call.1} parent=55 // pred_check_branch
          %707 = sbr.rel (%p705) target = $region60
        $region59: #{tpu_custom_call.1} parent=55 // pred_region
          %s708 = sand.u32 %s115, 1
          %s709 = scalar_lea.sflag [#allocation8], %s708
          %s710 = sand.u32 %s115, 1
          %s711 = smul.addr %s710, 128
          %s712 = scalar_lea.vmem [#allocation11], %s711
          %713 = dma.done %s709, 2048
        $region60: #{tpu_custom_call.1} parent=55 // pred_fallthru
          _
      $region56: #{tpu_custom_call.1} parent=5 // pred_fallthru
        _
    $region6: #{tpu_custom_call.1} parent=1 // loop_footer
      %s31 = sadd.s32 1, %s27
    $region7: #{tpu_custom_call.1} parent=1 // loop_footer_branch
      %26 = sbr.rel target = $region3
    $region8: #{tpu_custom_call.1} parent=1 // loop_exit
      _
    %714 = vsyncpa [#allocation7], 1
    %s715 = scalar_lea.sflag [#allocation7], 1
    %716 = vsyncpa %s715, 1
    %717 = vsyncpa [#allocation10], 1
    %s718 = scalar_lea.sflag [#allocation10], 1
    %719 = vsyncpa %s718, 1
    %720 = vsyncpa [#allocation8], 1
    %s721 = scalar_lea.sflag [#allocation8], 1
    %722 = vsyncpa %s721, 1

</llo_original>
